<compile_context>
chip_gen: v5e
topology: v5e:2x2
jax: 0.10.0
libtpu: 0.0.40
codegen_flags: <defaults>
</compile_context>

<pallas_src>
import functools

import jax
import jax.numpy as jnp
from jax.experimental import pallas as pl
from jax.experimental.pallas import tpu as pltpu


ENV_INFOS = [4, 2]   # env_infos[0] = observation dim = 4
HIDDEN = [32, 32]    # hidden layer sizes
LR = 0.01            # unused for the forward pass

_LANE = 128          # TPU lane width


def _value_mlp_kernel(n_hidden, *refs):
    """Transposed-layout value MLP; batch sits in the lane dimension.

    refs = (xT_ref, W1T, b1T, ..., WnT, bnT, w_out, b_out, o_ref)
      xT_ref : (in_dim, TB)        current batch tile, batch in lanes
      WiT    : (out_i, in_i)       hidden weight, transposed
      biT    : (out_i, 1)          hidden bias, column vector
      w_out  : (H_last, 1)         head weight (original orientation)
      b_out  : (1, 1)              head bias
      o_ref  : (1, TB)             lane-dense output tile
    """
    x_ref = refs[0]
    o_ref = refs[-1]
    param_refs = refs[1:-1]

    h = x_ref[...]                                   # (in_dim, TB), f32
    # Hidden layers: relu(W^T @ h + b^T)  ==  relu(x @ W + b)^T
    for i in range(n_hidden):
        wT = param_refs[2 * i][...]                  # (out, in)
        bT = param_refs[2 * i + 1][...]              # (out, 1)
        h = jnp.dot(wT, h, preferred_element_type=jnp.float32) + bT
        h = jnp.maximum(h, 0.0)
    # Output head: broadcast multiply + sublane reduction (VPU/XLU, no MXU).
    w_out = param_refs[2 * n_hidden][...]            # (H_last, 1)
    b_out = param_refs[2 * n_hidden + 1][...]        # (1, 1)
    o_ref[...] = jnp.sum(h * w_out, axis=0, keepdims=True) + b_out


def value_forward(x, params, *, tile_b=32768):
    """Value MLP forward pass as a batch-tiled, lane-dense Pallas kernel.

    x:      [B, in_dim] float32
    params: list of (W, b); W: [in, out], b: [1, out]; last pair is the head.
    Returns [B, 1] float32 (same semantics as the PyTorch module).
    """
    B, in_dim = x.shape
    n_hidden = len(params) - 1

    # Transposed ("batch-in-lanes") operand layout.
    xT = x.T.astype(jnp.float32)                     # (in_dim, B)
    flat = []
    for w, b in params[:-1]:
        flat.append(w.T.astype(jnp.float32))         # (out, in)
        flat.append(b.T.astype(jnp.float32))         # (out, 1)
    w_out, b_out = params[-1]
    flat.append(w_out.astype(jnp.float32))           # (H_last, 1)
    flat.append(b_out.astype(jnp.float32))           # (1, 1)

    # Lane-aligned batch tile; pad B up to a multiple of the tile so the last
    # grid step never touches out-of-bounds rows.
    b_pad = ((B + _LANE - 1) // _LANE) * _LANE
    tb = min(int(tile_b), b_pad)
    tb = ((tb + _LANE - 1) // _LANE) * _LANE
    b_pad = pl.cdiv(b_pad, tb) * tb
    if b_pad != B:
        xT = jnp.pad(xT, ((0, 0), (0, b_pad - B)))

    grid = (b_pad // tb,)

    in_specs = [pl.BlockSpec((in_dim, tb), lambda i: (0, i))]
    for p in flat:
        # Constant index_map -> weights/biases stay VMEM-resident across steps.
        in_specs.append(pl.BlockSpec(p.shape, lambda i: (0, 0)))
    out_spec = pl.BlockSpec((1, tb), lambda i: (0, i))

    # Advisory cost: memory-bound, cheap.
    dims = [in_dim] + [w.shape[1] for w, _ in params[:-1]] + [params[-1][0].shape[1]]
    flops = 2 * B * sum(dims[i] * dims[i + 1] for i in range(len(dims) - 1))
    param_bytes = sum(int(p.size) * 4 for p in flat)
    bytes_accessed = 4 * B * (in_dim + 1) + param_bytes

    kernel = functools.partial(_value_mlp_kernel, n_hidden)
    outT = pl.pallas_call(
        kernel,
        out_shape=jax.ShapeDtypeStruct((1, b_pad), jnp.float32),
        grid=grid,
        in_specs=in_specs,
        out_specs=out_spec,
        compiler_params=pltpu.CompilerParams(
            dimension_semantics=("parallel",),      # v7x: shard batch over 2 TCs
            vmem_limit_bytes=32 * 1024 * 1024,      # headroom over v5e's 16 MiB default
        ),
        cost_estimate=pl.CostEstimate(
            flops=int(flops), transcendentals=0, bytes_accessed=int(bytes_accessed)
        ),
    )(xT, *flat)

    return outT[:, :B].T                             # (B, 1)


def init_params(key, in_dim, hidden, out_dim=1):
    """Deterministic parameter init (mimics nn.Linear uniform init ranges)."""
    dims = [in_dim] + list(hidden) + [out_dim]
    params = []
    for i in range(len(dims) - 1):
        fan_in, fan_out = dims[i], dims[i + 1]
        key, kw, kb = jax.random.split(key, 3)
        bound = 1.0 / jnp.sqrt(fan_in)
        w = jax.random.uniform(kw, (fan_in, fan_out), jnp.float32, -bound, bound)
        b = jax.random.uniform(kb, (1, fan_out), jnp.float32, -bound, bound)
        params.append((w, b))
    return params


def value_forward_ref(x, params):
    """Pure-JAX reference for correctness checking."""
    h = x
    for w, b in params[:-1]:
        h = jnp.maximum(h @ w + b, 0.0)
    w, b = params[-1]
    return h @ w + b


if __name__ == "__main__":
    key = jax.random.PRNGKey(0)
    key, kx = jax.random.split(key)

    batch = 8
    x = jax.random.normal(kx, (batch, ENV_INFOS[0]), jnp.float32)
    params = init_params(key, ENV_INFOS[0], HIDDEN, out_dim=1)

    out = jax.block_until_ready(value_forward(x, params))
    ref = value_forward_ref(x, params)
    assert out.shape == (batch, 1), out.shape
    assert jnp.allclose(out, ref, atol=1e-5, rtol=1e-5), (out, ref)

    # Exercise the multi-tile grid path + ragged-batch padding.
    key, kx2 = jax.random.split(key)
    x2 = jax.random.normal(kx2, (300, ENV_INFOS[0]), jnp.float32)
    out2 = jax.block_until_ready(value_forward(x2, params, tile_b=128))
    ref2 = value_forward_ref(x2, params)
    assert out2.shape == (300, 1), out2.shape
    assert jnp.allclose(out2, ref2, atol=1e-5, rtol=1e-5)

    print("KERNEL_OK")
</pallas_src>

<mosaic_0001>
module attributes {stable_mosaic.version = 11 : i64} {
  func.func @_value_mlp_kernel(%arg0: i32, %arg1: memref<4x128xf32, #tpu.memory_space<vmem>>, %arg2: memref<32x4xf32, #tpu.memory_space<vmem>>, %arg3: memref<32x1xf32, #tpu.memory_space<vmem>>, %arg4: memref<32x32xf32, #tpu.memory_space<vmem>>, %arg5: memref<32x1xf32, #tpu.memory_space<vmem>>, %arg6: memref<32x1xf32, #tpu.memory_space<vmem>>, %arg7: memref<1x1xf32, #tpu.memory_space<vmem>>, %arg8: memref<1x128xf32, #tpu.memory_space<vmem>>) attributes {dimension_semantics = [#tpu.dimension_semantics<parallel>], iteration_bounds = array<i64: 1>, scalar_prefetch = 0 : i64, scratch_operands = 0 : i64, tpu.core_type = #tpu.core_type<tc>, window_params = [{transform_indices = @transform_0, window_bounds = array<i64: 4, 128>}, {pipeline_mode = #tpu.pipeline_mode<synchronous>, transform_indices = @transform_1, window_bounds = array<i64: 32, 4>}, {pipeline_mode = #tpu.pipeline_mode<synchronous>, transform_indices = @transform_2, window_bounds = array<i64: 32, 1>}, {pipeline_mode = #tpu.pipeline_mode<synchronous>, transform_indices = @transform_3, window_bounds = array<i64: 32, 32>}, {pipeline_mode = #tpu.pipeline_mode<synchronous>, transform_indices = @transform_4, window_bounds = array<i64: 32, 1>}, {pipeline_mode = #tpu.pipeline_mode<synchronous>, transform_indices = @transform_5, window_bounds = array<i64: 32, 1>}, {pipeline_mode = #tpu.pipeline_mode<synchronous>, transform_indices = @transform_6, window_bounds = array<i64: 1, 1>}, {transform_indices = @transform_7, window_bounds = array<i64: 1, 128>}]} {
    %c0 = arith.constant 0 : index
    %c0_0 = arith.constant 0 : index
    %0 = vector.load %arg1[%c0, %c0_0] : memref<4x128xf32, #tpu.memory_space<vmem>>, vector<4x128xf32>
    %c0_1 = arith.constant 0 : index
    %c0_2 = arith.constant 0 : index
    %1 = vector.load %arg2[%c0_1, %c0_2] : memref<32x4xf32, #tpu.memory_space<vmem>>, vector<32x4xf32>
    %c0_3 = arith.constant 0 : index
    %c0_4 = arith.constant 0 : index
    %2 = vector.load %arg3[%c0_3, %c0_4] : memref<32x1xf32, #tpu.memory_space<vmem>>, vector<32x1xf32>
    %cst = arith.constant dense<0.000000e+00> : vector<32x128xf32>
    %3 = tpu.matmul %1, %0, %cst {dimension_numbers = #tpu.dot_dimension_numbers<[1], [0], [0], [1], [0, 0, 1, 1], [], []>} : vector<32x4xf32>, vector<4x128xf32>, vector<32x128xf32> -> vector<32x128xf32>
    %4 = vector.broadcast %2 : vector<32x1xf32> to vector<32x128xf32>
    %5 = arith.addf %3, %4 : vector<32x128xf32>
    %cst_5 = arith.constant 0.000000e+00 : f32
    %6 = vector.broadcast %cst_5 : f32 to vector<32x128xf32>
    %7 = arith.maximumf %5, %6 : vector<32x128xf32>
    %c0_6 = arith.constant 0 : index
    %c0_7 = arith.constant 0 : index
    %8 = vector.load %arg4[%c0_6, %c0_7] : memref<32x32xf32, #tpu.memory_space<vmem>>, vector<32x32xf32>
    %c0_8 = arith.constant 0 : index
    %c0_9 = arith.constant 0 : index
    %9 = vector.load %arg5[%c0_8, %c0_9] : memref<32x1xf32, #tpu.memory_space<vmem>>, vector<32x1xf32>
    %cst_10 = arith.constant dense<0.000000e+00> : vector<32x128xf32>
    %10 = tpu.matmul %8, %7, %cst_10 {dimension_numbers = #tpu.dot_dimension_numbers<[1], [0], [0], [1], [0, 0, 1, 1], [], []>} : vector<32x32xf32>, vector<32x128xf32>, vector<32x128xf32> -> vector<32x128xf32>
    %11 = vector.broadcast %9 : vector<32x1xf32> to vector<32x128xf32>
    %12 = arith.addf %10, %11 : vector<32x128xf32>
    %cst_11 = arith.constant 0.000000e+00 : f32
    %13 = vector.broadcast %cst_11 : f32 to vector<32x128xf32>
    %14 = arith.maximumf %12, %13 : vector<32x128xf32>
    %c0_12 = arith.constant 0 : index
    %c0_13 = arith.constant 0 : index
    %15 = vector.load %arg6[%c0_12, %c0_13] : memref<32x1xf32, #tpu.memory_space<vmem>>, vector<32x1xf32>
    %c0_14 = arith.constant 0 : index
    %c0_15 = arith.constant 0 : index
    %16 = vector.load %arg7[%c0_14, %c0_15] : memref<1x1xf32, #tpu.memory_space<vmem>>, vector<1x1xf32>
    %17 = vector.broadcast %15 : vector<32x1xf32> to vector<32x128xf32>
    %18 = arith.mulf %14, %17 : vector<32x128xf32>
    %cst_16 = arith.constant dense<0.000000e+00> : vector<128xf32>
    %19 = vector.multi_reduction <add>, %18, %cst_16 [0] : vector<32x128xf32> to vector<128xf32>
    %20 = vector.shape_cast %19 : vector<128xf32> to vector<1x128xf32>
    %21 = vector.broadcast %16 : vector<1x1xf32> to vector<1x128xf32>
    %22 = arith.addf %20, %21 : vector<1x128xf32>
    %c0_17 = arith.constant 0 : index
    %c0_18 = arith.constant 0 : index
    %23 = vector.load %arg8[%c0_17, %c0_18] : memref<1x128xf32, #tpu.memory_space<vmem>>, vector<1x128xf32>
    tpu.vector_store %arg8[%c0_17, %c0_18], %22 {strides = array<i32>} : memref<1x128xf32, #tpu.memory_space<vmem>>, vector<1x128xf32>,
    return
  }
  func.func @transform_0(%arg0: i32) -> (i32, i32) {
    %c0_i32 = arith.constant 0 : i32
    %c0_i32_0 = arith.constant 0 : i32
    return %c0_i32, %arg0 : i32, i32
  }
  func.func @transform_1(%arg0: i32) -> (i32, i32) {
    %c0_i32 = arith.constant 0 : i32
    %c0_i32_0 = arith.constant 0 : i32
    %c0_i32_1 = arith.constant 0 : i32
    return %c0_i32, %c0_i32_0 : i32, i32
  }
  func.func @transform_2(%arg0: i32) -> (i32, i32) {
    %c0_i32 = arith.constant 0 : i32
    %c0_i32_0 = arith.constant 0 : i32
    %c0_i32_1 = arith.constant 0 : i32
    return %c0_i32, %c0_i32_0 : i32, i32
  }
  func.func @transform_3(%arg0: i32) -> (i32, i32) {
    %c0_i32 = arith.constant 0 : i32
    %c0_i32_0 = arith.constant 0 : i32
    %c0_i32_1 = arith.constant 0 : i32
    return %c0_i32, %c0_i32_0 : i32, i32
  }
  func.func @transform_4(%arg0: i32) -> (i32, i32) {
    %c0_i32 = arith.constant 0 : i32
    %c0_i32_0 = arith.constant 0 : i32
    %c0_i32_1 = arith.constant 0 : i32
    return %c0_i32, %c0_i32_0 : i32, i32
  }
  func.func @transform_5(%arg0: i32) -> (i32, i32) {
    %c0_i32 = arith.constant 0 : i32
    %c0_i32_0 = arith.constant 0 : i32
    %c0_i32_1 = arith.constant 0 : i32
    return %c0_i32, %c0_i32_0 : i32, i32
  }
  func.func @transform_6(%arg0: i32) -> (i32, i32) {
    %c0_i32 = arith.constant 0 : i32
    %c0_i32_0 = arith.constant 0 : i32
    %c0_i32_1 = arith.constant 0 : i32
    return %c0_i32, %c0_i32_0 : i32, i32
  }
  func.func @transform_7(%arg0: i32) -> (i32, i32) {
    %c0_i32 = arith.constant 0 : i32
    %c0_i32_0 = arith.constant 0 : i32
    return %c0_i32, %arg0 : i32, i32
  }
}

</mosaic_0001>

<llo_original>
// kernel: tpu_custom_call.1
$region0: #{tpu_custom_call.1}
  #allocation0 [shape = 'u32[]', space=smem, size = 0x4, offset = 0x4, fixed_abs, tag = 'smem constant byte address 0x4 - core index']
  #allocation1 [shape = 'u32[72,128]{1,0:T(1,128)}', space=vmem, size = 0x9000, scoped, tag = 'internal scratch']
  #allocation2 [shape = 'f32[1,1]{1,0:T(1,128)S(1)}', space=vmem, size = 0x200, scoped, tag = 'scoped memory for tpu_custom_call.1']
  %s0 = inlined_call_operand.vmem [shape: f32[4,128], index: 0, kind: input, shape index: {}]
  %s1 = inlined_call_operand.vmem [shape: f32[32,4], index: 1, kind: input, shape index: {}]
  %s2 = inlined_call_operand.vmem [shape: f32[32,1], index: 2, kind: input, shape index: {}]
  %s3 = inlined_call_operand.vmem [shape: f32[32,32], index: 3, kind: input, shape index: {}]
  %s4 = inlined_call_operand.vmem [shape: f32[32,1], index: 4, kind: input, shape index: {}]
  %s5 = inlined_call_operand.vmem [shape: f32[32,1], index: 5, kind: input, shape index: {}]
  %s6 = inlined_call_operand.<no memory space> [shape: f32[1,1], index: 6, kind: input, shape index: {}]
  %s7 = inlined_call_operand.hbm [shape: f32[1,128], index: 7, kind: output, shape index: {}]
  %s8 = sld [smem:[#allocation0]]
  $region38: #{tpu_custom_call.1} parent=0
    _
  %s10 = ssub.s32 1, %s8
  %s11 = scalar_select 0, %s10, %s8
  %v12 = vstv %s6
  %13 = vst [vmem:[#allocation2] sm:$0x1] %v12
  $region1: #{tpu_custom_call.1} parent=0
    #allocation3 [shape = 'u8[512]{0}', space=vmem, size = 0x400, scoped, tag = 'output window, operand 0, single buffered']
    #allocation4 [shape = 's32[1]{0}', space=sflag, size = 0x4, scoped, tag = 'scoped memory for tpu_custom_call.1']
    %14 = vsyncpa [#allocation4], 0
    // Predicated region
    $region2: #{tpu_custom_call.1} parent=1 // pred_check
      _
    $region3: #{tpu_custom_call.1} parent=1 // pred_check_branch
      %16 = sbr.rel (0) target = $region5
    $region4: #{tpu_custom_call.1} parent=1 // pred_region
      _
    $region5: #{tpu_custom_call.1} parent=1 // pred_fallthru
      _
    // Predicated region
    $region6: #{tpu_custom_call.1} parent=1 // pred_check
      _
    $region7: #{tpu_custom_call.1} parent=1 // pred_check_branch
      %18 = sbr.rel (0) target = $region9
    $region8: #{tpu_custom_call.1} parent=1 // pred_region
      _
    $region9: #{tpu_custom_call.1} parent=1 // pred_fallthru
      _
    // Predicated region
    $region10: #{tpu_custom_call.1} parent=1 // pred_check
      _
    $region11: #{tpu_custom_call.1} parent=1 // pred_check_branch
      %20 = sbr.rel (0) target = $region13
    $region12: #{tpu_custom_call.1} parent=1 // pred_region
      _
    $region13: #{tpu_custom_call.1} parent=1 // pred_fallthru
      _
    // Predicated region
    $region14: #{tpu_custom_call.1} parent=1 // pred_check
      _
    $region15: #{tpu_custom_call.1} parent=1 // pred_check_branch
      %22 = sbr.rel (0) target = $region17
    $region16: #{tpu_custom_call.1} parent=1 // pred_region
      _
    $region17: #{tpu_custom_call.1} parent=1 // pred_fallthru
      _
    // Predicated region
    $region18: #{tpu_custom_call.1} parent=1 // pred_check
      _
    $region19: #{tpu_custom_call.1} parent=1 // pred_check_branch
      %24 = sbr.rel (0) target = $region21
    $region20: #{tpu_custom_call.1} parent=1 // pred_region
      _
    $region21: #{tpu_custom_call.1} parent=1 // pred_fallthru
      _
    // Predicated region
    $region22: #{tpu_custom_call.1} parent=1 // pred_check
      _
    $region23: #{tpu_custom_call.1} parent=1 // pred_check_branch
      %26 = sbr.rel (0) target = $region25
    $region24: #{tpu_custom_call.1} parent=1 // pred_region
      _
    $region25: #{tpu_custom_call.1} parent=1 // pred_fallthru
      _
    // Predicated region
    $region26: #{tpu_custom_call.1} parent=1 // pred_check
      _
    $region27: #{tpu_custom_call.1} parent=1 // pred_check_branch
      %28 = sbr.rel (0) target = $region29
    $region28: #{tpu_custom_call.1} parent=1 // pred_region
      _
    $region29: #{tpu_custom_call.1} parent=1 // pred_fallthru
      _
    %v29 = vld [vmem:[%s0] sm:$0xf]
    %v30 = vld [vmem:[%s1] sm:$0xff]
    %v31 = vld [vmem:[%s1 + $0x8] sm:$0xff]
    %v32 = vld [vmem:[%s1 + $0x10] sm:$0xff]
    %v33 = vld [vmem:[%s1 + $0x18] sm:$0xff]
    %v34 = vld [vmem:[%s2] sm:$0xff]
    %v35 = vld [vmem:[%s2 + $0x8] sm:$0xff]
    %v36 = vld [vmem:[%s2 + $0x10] sm:$0xff]
    %v37 = vld [vmem:[%s2 + $0x18] sm:$0xff]
    %39 = vset.pattern.permute.xlu0 0
    %40 = vperm.xlu0 %39, %v34
    %v41 = vpop.permute.xlu0 %40
    %44 = vset.pattern.permute.xlu0 0
    %45 = vperm.xlu0 %44, %v35
    %v46 = vpop.permute.xlu0 %45
    %49 = vset.pattern.permute.xlu0 0
    %50 = vperm.xlu0 %49, %v36
    %v51 = vpop.permute.xlu0 %50
    %54 = vset.pattern.permute.xlu0 0
    %55 = vperm.xlu0 %54, %v37
    %v56 = vpop.permute.xlu0 %55
    %vm58 = vcmask 31744
    %v60 = vsel %vm58, %v30, 0
    %v63 = vsel %vm58, %v31, 0
    %v66 = vsel %vm58, %v32, 0
    %v69 = vsel %vm58, %v33, 0
    %vm71 = vcmask 1043456
    %v73 = vsel %vm71, %v29, 0
    %75 = vmatpush.msra.mxu0 0.0
    %76 = vmatpush.msra.mxu0 0.0
    %77 = vmatpush.msra.mxu0 0.0
    %78 = vmatpush.msra.mxu0 0.0
    %79 = vmatpush.msra.mxu0 0.0
    %80 = vmatpush.msra.mxu0 0.0
    %81 = vmatpush.msra.mxu0 0.0
    %82 = vmatpush.msra.mxu0 0.0
    %83 = vmatpush.msra.mxu0 0.0
    %84 = vmatpush.msra.mxu0 0.0
    %85 = vmatpush.msra.mxu0 0.0
    %86 = vmatpush.msra.mxu0 0.0
    %87 = vmatpush.msra.mxu0 0.0
    %88 = vmatpush.msra.mxu0 0.0
    %89 = vmatpush.msra.mxu0 0.0
    %90 = vmatpush.msra.mxu0 %v73
    %91 = vmatmul.f32.gmra.mxu0 %v60
    %v92 = vpop.f32.mrf.mxu0
    %v93 = vadd.f32 %v41, %v92
    %94 = vmatmul.f32.gmra.mxu0 %v63
    %v95 = vpop.f32.mrf.mxu0
    %v96 = vadd.f32 %v46, %v95
    %97 = vmatmul.f32.gmra.mxu0 %v66
    %v98 = vpop.f32.mrf.mxu0
    %v99 = vadd.f32 %v51, %v98
    %100 = vmatmul.f32.gmra.mxu0 %v69
    %v101 = vpop.f32.mrf.mxu0
    %v102 = vadd.f32 %v56, %v101
    %103 = vdwg.mxu0
    %v104 = vmax.f32 %v93, 0.0
    %v105 = vmax.f32 %v96, 0.0
    %v106 = vmax.f32 %v99, 0.0
    %v107 = vmax.f32 %v102, 0.0
    %v108 = vld [vmem:[%s3] sm:$0xff]
    %v109 = vld [vmem:[%s3 + $0x8] sm:$0xff]
    %v110 = vld [vmem:[%s3 + $0x10] sm:$0xff]
    %v111 = vld [vmem:[%s3 + $0x18] sm:$0xff]
    %v112 = vld [vmem:[%s4] sm:$0xff]
    %v113 = vld [vmem:[%s4 + $0x8] sm:$0xff]
    %v114 = vld [vmem:[%s4 + $0x10] sm:$0xff]
    %v115 = vld [vmem:[%s4 + $0x18] sm:$0xff]
    %117 = vset.pattern.permute.xlu0 0
    %118 = vperm.xlu0 %117, %v112
    %v119 = vpop.permute.xlu0 %118
    %122 = vset.pattern.permute.xlu0 0
    %123 = vperm.xlu0 %122, %v113
    %v124 = vpop.permute.xlu0 %123
    %127 = vset.pattern.permute.xlu0 0
    %128 = vperm.xlu0 %127, %v114
    %v129 = vpop.permute.xlu0 %128
    %132 = vset.pattern.permute.xlu0 0
    %133 = vperm.xlu0 %132, %v115
    %v134 = vpop.permute.xlu0 %133
    %vm136 = vcmask 261120
    %v138 = vsel %vm136, %v108, 0
    %v141 = vsel %vm136, %v109, 0
    %v144 = vsel %vm136, %v110, 0
    %v147 = vsel %vm136, %v111, 0
    %149 = vmatpush.msra.mxu0 0.0
    %150 = vmatpush.msra.mxu0 0.0
    %151 = vmatpush.msra.mxu0 0.0
    %152 = vmatpush.msra.mxu0 0.0
    %153 = vmatpush.msra.mxu0 0.0
    %154 = vmatpush.msra.mxu0 0.0
    %155 = vmatpush.msra.mxu0 0.0
    %156 = vmatpush.msra.mxu0 0.0
    %157 = vmatpush.msra.mxu0 0.0
    %158 = vmatpush.msra.mxu0 0.0
    %159 = vmatpush.msra.mxu0 0.0
    %160 = vmatpush.msra.mxu0 0.0
    %161 = vmatpush.msra.mxu0 %v107
    %162 = vmatpush.msra.mxu0 %v106
    %163 = vmatpush.msra.mxu0 %v105
    %164 = vmatpush.msra.mxu0 %v104
    %165 = vmatmul.f32.gmra.mxu0 %v138
    %v166 = vpop.f32.mrf.mxu0
    %v167 = vadd.f32 %v119, %v166
    %168 = vmatmul.f32.gmra.mxu0 %v141
    %v169 = vpop.f32.mrf.mxu0
    %v170 = vadd.f32 %v124, %v169
    %171 = vmatmul.f32.gmra.mxu0 %v144
    %v172 = vpop.f32.mrf.mxu0
    %v173 = vadd.f32 %v129, %v172
    %174 = vmatmul.f32.gmra.mxu0 %v147
    %v175 = vpop.f32.mrf.mxu0
    %v176 = vadd.f32 %v134, %v175
    %177 = vdwg.mxu0
    %v178 = vmax.f32 %v167, 0.0
    %v179 = vmax.f32 %v170, 0.0
    %v180 = vmax.f32 %v173, 0.0
    %v181 = vmax.f32 %v176, 0.0
    %v182 = vld [vmem:[%s5] sm:$0xff]
    %v183 = vld [vmem:[%s5 + $0x8] sm:$0xff]
    %v184 = vld [vmem:[%s5 + $0x10] sm:$0xff]
    %v185 = vld [vmem:[%s5 + $0x18] sm:$0xff]
    %v186 = vld [vmem:[#allocation2] sm:$0x1]
    %188 = vset.pattern.permute.xlu0 0
    %189 = vperm.xlu0 %188, %v182
    %v190 = vpop.permute.xlu0 %189
    %193 = vset.pattern.permute.xlu0 0
    %194 = vperm.xlu0 %193, %v183
    %v195 = vpop.permute.xlu0 %194
    %198 = vset.pattern.permute.xlu0 0
    %199 = vperm.xlu0 %198, %v184
    %v200 = vpop.permute.xlu0 %199
    %203 = vset.pattern.permute.xlu0 0
    %204 = vperm.xlu0 %203, %v185
    %v205 = vpop.permute.xlu0 %204
    %v207 = vmul.f32 %v178, %v190
    %v208 = vmul.f32 %v179, %v195
    %v209 = vmul.f32 %v180, %v200
    %v210 = vmul.f32 %v181, %v205
    %v211 = vadd.f32 %v207, %v208
    %v212 = vadd.f32 %v211, %v209
    %v213 = vadd.f32 %v212, %v210
    %v214 = vrot.slane %v213, 4
    %v215 = vadd.f32 %v213, %v214
    %v216 = vrot.slane %v215, 2
    %v217 = vadd.f32 %v215, %v216
    %v218 = vrot.slane %v217, 1
    %v219 = vadd.f32 %v217, %v218
    %221 = vset.pattern.permute.xlu0 0
    %222 = vperm.xlu0 %221, %v186
    %v223 = vpop.permute.xlu0 %222
    %v225 = vperm.slane %v223, 0
    %v226 = vadd.f32 %v219, %v225
    %227 = vst [vmem:[#allocation3] sm:$0x1] %v226
    // Predicated region
    $region30: #{tpu_custom_call.1} parent=1 // pred_check
      _
    $region31: #{tpu_custom_call.1} parent=1 // pred_check_branch
      %229 = sbr.rel (0) target = $region33
    $region32: #{tpu_custom_call.1} parent=1 // pred_region
      %231 = vsyncadd [#allocation4], 0
      %s233 = sshll.u32 [#allocation3], 4
      %s234 = int_to_ptr.vmem [resolvable:$true] %s233
      %s235 = sshll.u32 %s7, 4
      %s236 = int_to_ptr.hbm [resolvable:$true] %s235
      %238 = dma.vmem_to_hbm [thread:$0]  %s234, 16, %s236, [#allocation4]
    $region33: #{tpu_custom_call.1} parent=1 // pred_fallthru
      _
    // Predicated region
    $region34: #{tpu_custom_call.1} parent=1 // pred_check
      _
    $region35: #{tpu_custom_call.1} parent=1 // pred_check_branch
      %240 = sbr.rel (0) target = $region37
    $region36: #{tpu_custom_call.1} parent=1 // pred_region
      %242 = dma.done [#allocation4], 16
    $region37: #{tpu_custom_call.1} parent=1 // pred_fallthru
      _
    %243 = vsyncpa [#allocation4], 1

</llo_original>
